<compile_context>
chip_gen: v7x
topology: tpu7x:2x2x1
jax: 0.10.0
libtpu: 0.0.40
codegen_flags: <defaults>
</compile_context>

<pallas_src>
import jax
import jax.numpy as jnp
from jax.experimental import pallas as pl
from jax.experimental.pallas import tpu as pltpu

_LANE = 128
_ROW_ALIGN = 32          # multiple of sublane packing for f32/bf16/int8 rows
_MAX_LANES = 16384       # cap on the lane (last-dim) tile


def _round_up(a, b):
    return -(-a // b) * b


def _make_bce_kernel(row_tile, col_tile, acc_rows, n_rows, n_cols,
                     row_tiles_per_split, need_row_mask, need_col_mask):
    def kernel(x_ref, y_ref, o_ref):
        s = pl.program_id(0)
        i = pl.program_id(1)
        j = pl.program_id(2)

        @pl.when((i == 0) & (j == 0))
        def _():
            o_ref[...] = jnp.zeros_like(o_ref)

        x = x_ref[...].astype(jnp.float32)
        y = y_ref[...].astype(jnp.float32)
        # Numerically stable BCE-with-logits (same per-element formula as torch).
        bce = jnp.maximum(x, 0.0) - x * y + jnp.log1p(jnp.exp(-jnp.abs(x)))

        if need_row_mask or need_col_mask:
            mask = None
            if need_row_mask:
                r0 = (s * row_tiles_per_split + i) * row_tile
                rows = r0 + jax.lax.broadcasted_iota(
                    jnp.int32, (row_tile, col_tile), 0)
                mask = rows < n_rows
            if need_col_mask:
                cols = j * col_tile + jax.lax.broadcasted_iota(
                    jnp.int32, (row_tile, col_tile), 1)
                cmask = cols < n_cols
                mask = cmask if mask is None else (mask & cmask)
            bce = jnp.where(mask, bce, 0.0)

        if row_tile != acc_rows:
            # Sublane-block fold: pure vreg-wise VPU adds, no cross-lane work.
            bce = bce.reshape(row_tile // acc_rows, acc_rows, col_tile).sum(axis=0)
        o_ref[...] += bce

    return kernel


def standard_loss_wrapper(x, ground_truth, *, norm, num_splits=None,
                          target_block_bytes=4 << 20):
    """norm * BCEWithLogitsLoss(reduction='mean')(x, ground_truth) via Pallas."""
    assert x.shape == ground_truth.shape
    count = int(x.size)
    assert count > 0

    # ---- canonicalize to 2-D without materializing any padded copy ----------
    if x.ndim == 2:
        x2, y2 = x, ground_truth
    else:
        if count % _LANE == 0:
            x2 = x.reshape(count // _LANE, _LANE)
            y2 = ground_truth.reshape(count // _LANE, _LANE)
        else:
            # Ragged flat length: single-row layout, lane tail masked in-kernel.
            x2 = x.reshape(1, count)
            y2 = ground_truth.reshape(1, count)
    N, M = x2.shape
    Mp128 = _round_up(M, _LANE)

    # ---- megacore split (leading "parallel" grid axis) -----------------------
    if num_splits is None:
        num_splits = 2 if (count >= (1 << 20) and N >= 4 * _ROW_ALIGN) else 1
    splits = num_splits if N >= num_splits * _ROW_ALIGN else 1
    rows_per_split = -(-N // splits)

    # ---- tile selection (lanes multiple of 128, rows multiple of 32) --------
    if N <= _ROW_ALIGN:                       # short-and-wide: splits == 1
        row_tile = N                          # full row dim (always layout-legal)
        col_tile = min(
            Mp128, _MAX_LANES,
            max(4 * _LANE,
                (target_block_bytes // (_round_up(max(N, 1), 8) * 4))
                // _LANE * _LANE))
    else:
        col_tile = min(Mp128, 4 * _LANE)
        max_rows = max(_ROW_ALIGN,
                       (target_block_bytes // (col_tile * 4))
                       // _ROW_ALIGN * _ROW_ALIGN)
        row_tile = min(max_rows, _round_up(rows_per_split, _ROW_ALIGN))
        if row_tile * col_tile * 4 < target_block_bytes:
            # Few rows but many columns: widen the lane tile instead.
            col_tile = min(Mp128, _MAX_LANES,
                           max(col_tile,
                               (target_block_bytes // (row_tile * 4))
                               // _LANE * _LANE))

    row_tiles_per_split = -(-rows_per_split // row_tile)
    grid_j = -(-M // col_tile)
    grid = (splits, row_tiles_per_split, grid_j)

    need_row_mask = splits * row_tiles_per_split * row_tile != N
    need_col_mask = grid_j * col_tile != M

    acc_rows = 8 if row_tile % 8 == 0 else row_tile

    kernel = _make_bce_kernel(row_tile, col_tile, acc_rows, N, M,
                              row_tiles_per_split, need_row_mask, need_col_mask)

    def in_map(s, i, j):
        return (s * row_tiles_per_split + i, j)

    cost = pl.CostEstimate(
        flops=5 * count,
        transcendentals=2 * count,
        bytes_accessed=int(count * (x2.dtype.itemsize + y2.dtype.itemsize)
                           + splits * acc_rows * col_tile * 4),
    )

    # VMEM need: double-buffered inputs + resident per-split output block.
    blk_rows_pad = _round_up(row_tile, 8)
    vmem_need = (2 * blk_rows_pad * col_tile
                 * (x2.dtype.itemsize + y2.dtype.itemsize)
                 + 2 * _round_up(acc_rows, 8) * col_tile * 4)
    vmem_limit = int(min(48 << 20, max(16 << 20, 2 * vmem_need)))

    partials = pl.pallas_call(
        kernel,
        out_shape=jax.ShapeDtypeStruct((splits * acc_rows, col_tile), jnp.float32),
        grid_spec=pltpu.PrefetchScalarGridSpec(
            num_scalar_prefetch=0,
            grid=grid,
            in_specs=[
                pl.BlockSpec((row_tile, col_tile), in_map),
                pl.BlockSpec((row_tile, col_tile), in_map),
            ],
            out_specs=pl.BlockSpec((acc_rows, col_tile), lambda s, i, j: (s, 0)),
        ),
        compiler_params=pltpu.CompilerParams(
            dimension_semantics=("parallel", "arbitrary", "arbitrary"),
            vmem_limit_bytes=vmem_limit,
        ),
        cost_estimate=cost,
    )(x2, y2)

    # Every position of each partial block holds a genuine partial sum;
    # masked-out padding contributed exact zeros.
    return (norm / count) * jnp.sum(partials)


def _reference(x, y, norm):
    xf = x.astype(jnp.float32)
    yf = y.astype(jnp.float32)
    per_elem = jnp.maximum(xf, 0.0) - xf * yf + jnp.log1p(jnp.exp(-jnp.abs(xf)))
    return norm * jnp.mean(per_elem)


if __name__ == "__main__":
    key = jax.random.PRNGKey(0)
    k1, k2 = jax.random.split(key)

    # Small decoder-output-style shape: 128 node-pairs x 256 logits per row.
    N, M = 128, 256
    x = jax.random.normal(k1, (N, M), dtype=jnp.float32)  # batch.x (logits)
    # Binary adjacency targets: bf16 is exact for 0/1 and halves HBM traffic.
    ground_truth = (jax.random.uniform(k2, (N, M)) > 0.5).astype(jnp.bfloat16)

    # norm as used in gravity-GAE: num_nodes^2 / (2 * num_neg_edges)-style scalar.
    norm = 1.3

    out = standard_loss_wrapper(x, ground_truth, norm=norm)
    out = jax.block_until_ready(out)

    ref = _reference(x, ground_truth, norm)
    assert jnp.allclose(out, ref, rtol=1e-5, atol=1e-5), (out, ref)
    print("KERNEL_OK")
</pallas_src>

<mosaic_0001>
module attributes {stable_mosaic.version = 11 : i64} {
  func.func @kernel(%arg0: i32, %arg1: i32, %arg2: i32, %arg3: memref<128x256xf32, #tpu.memory_space<vmem>>, %arg4: memref<128x256xbf16, #tpu.memory_space<vmem>>, %arg5: memref<8x256xf32, #tpu.memory_space<vmem>>) attributes {dimension_semantics = [#tpu.dimension_semantics<parallel>, #tpu.dimension_semantics<arbitrary>, #tpu.dimension_semantics<arbitrary>], iteration_bounds = array<i64: 1, 1, 1>, scalar_prefetch = 0 : i64, scratch_operands = 0 : i64, tpu.core_type = #tpu.core_type<tc>, window_params = [{transform_indices = @transform_0, window_bounds = array<i64: 128, 256>}, {transform_indices = @transform_1, window_bounds = array<i64: 128, 256>}, {transform_indices = @transform_2, window_bounds = array<i64: 8, 256>}]} {
    %c0_i32 = arith.constant 0 : i32
    %0 = arith.cmpi eq, %arg1, %c0_i32 : i32
    %c0_i32_0 = arith.constant 0 : i32
    %1 = arith.cmpi eq, %arg2, %c0_i32_0 : i32
    %2 = arith.andi %0, %1 : i1
    %3 = arith.extui %2 : i1 to i32
    %c0_i32_1 = arith.constant 0 : i32
    %4 = arith.cmpi ne, %3, %c0_i32_1 : i32
    scf.if %4 {
      %cst_11 = arith.constant 0.000000e+00 : f32
      %23 = vector.broadcast %cst_11 : f32 to vector<8x256xf32>
      %c0_12 = arith.constant 0 : index
      %c0_13 = arith.constant 0 : index
      %24 = vector.load %arg5[%c0_12, %c0_13] : memref<8x256xf32, #tpu.memory_space<vmem>>, vector<8x256xf32>
      tpu.vector_store %arg5[%c0_12, %c0_13], %23 {strides = array<i32>} : memref<8x256xf32, #tpu.memory_space<vmem>>, vector<8x256xf32>,
    } else {
    }
    %c0 = arith.constant 0 : index
    %c0_2 = arith.constant 0 : index
    %5 = vector.load %arg3[%c0, %c0_2] : memref<128x256xf32, #tpu.memory_space<vmem>>, vector<128x256xf32>
    %c0_3 = arith.constant 0 : index
    %c0_4 = arith.constant 0 : index
    %6 = vector.load %arg4[%c0_3, %c0_4] : memref<128x256xbf16, #tpu.memory_space<vmem>>, vector<128x256xbf16>
    %7 = arith.extf %6 : vector<128x256xbf16> to vector<128x256xf32>
    %cst = arith.constant 0.000000e+00 : f32
    %8 = vector.broadcast %cst : f32 to vector<128x256xf32>
    %9 = arith.maximumf %5, %8 : vector<128x256xf32>
    %10 = arith.mulf %5, %7 : vector<128x256xf32>
    %11 = arith.subf %9, %10 : vector<128x256xf32>
    %12 = math.absf %5 : vector<128x256xf32>
    %cst_5 = arith.constant 0.000000e+00 : f32
    %13 = vector.broadcast %cst_5 : f32 to vector<128x256xf32>
    %14 = arith.subf %13, %12 : vector<128x256xf32>
    %15 = math.exp %14 : vector<128x256xf32>
    %16 = math.log1p %15 : vector<128x256xf32>
    %17 = arith.addf %11, %16 : vector<128x256xf32>
    %18 = vector.shape_cast %17 : vector<128x256xf32> to vector<16x8x256xf32>
    %cst_6 = arith.constant dense<0.000000e+00> : vector<8x256xf32>
    %19 = vector.multi_reduction <add>, %18, %cst_6 [0] : vector<16x8x256xf32> to vector<8x256xf32>
    %c0_7 = arith.constant 0 : index
    %c0_8 = arith.constant 0 : index
    %20 = vector.load %arg5[%c0_7, %c0_8] : memref<8x256xf32, #tpu.memory_space<vmem>>, vector<8x256xf32>
    %21 = arith.addf %20, %19 : vector<8x256xf32>
    %c0_9 = arith.constant 0 : index
    %c0_10 = arith.constant 0 : index
    %22 = vector.load %arg5[%c0_9, %c0_10] : memref<8x256xf32, #tpu.memory_space<vmem>>, vector<8x256xf32>
    tpu.vector_store %arg5[%c0_9, %c0_10], %21 {strides = array<i32>} : memref<8x256xf32, #tpu.memory_space<vmem>>, vector<8x256xf32>,
    return
  }
  func.func @transform_0(%arg0: i32, %arg1: i32, %arg2: i32) -> (i32, i32) {
    %c1_i32 = arith.constant 1 : i32
    %0 = arith.muli %arg0, %c1_i32 : i32
    %1 = arith.addi %0, %arg1 : i32
    %c0_i32 = arith.constant 0 : i32
    return %1, %arg2 : i32, i32
  }
  func.func @transform_1(%arg0: i32, %arg1: i32, %arg2: i32) -> (i32, i32) {
    %c1_i32 = arith.constant 1 : i32
    %0 = arith.muli %arg0, %c1_i32 : i32
    %1 = arith.addi %0, %arg1 : i32
    %c0_i32 = arith.constant 0 : i32
    return %1, %arg2 : i32, i32
  }
  func.func @transform_2(%arg0: i32, %arg1: i32, %arg2: i32) -> (i32, i32) {
    %c0_i32 = arith.constant 0 : i32
    %c0_i32_0 = arith.constant 0 : i32
    return %arg0, %c0_i32 : i32, i32
  }
}

</mosaic_0001>

<llo_original>
// kernel: tpu_custom_call.1
$region0: #{tpu_custom_call.1}
  #allocation0 [shape = 'u32[]', space=smem, size = 0x4, offset = 0x4, fixed_abs, tag = 'smem constant byte address 0x4 - core index']
  #allocation1 [shape = 'u32[144,128]{1,0:T(1,128)}', space=vmem, size = 0x12000, scoped, tag = 'internal scratch']
  %s0 = inlined_call_operand.hbm [shape: f32[128,256], index: 0, kind: input, shape index: {}]
  %s1 = inlined_call_operand.hbm [shape: bf16[128,256], index: 1, kind: input, shape index: {}]
  %s2 = inlined_call_operand.hbm [shape: f32[8,256], index: 2, kind: output, shape index: {}]
  %s3 = sld [smem:[#allocation0]]
  $region30: #{tpu_custom_call.1} parent=0
    _
  %s5 = ssub.s32 1, %s3
  %s6 = scalar_select 0, %s5, %s3
  $region1: #{tpu_custom_call.1} parent=0
    #allocation2 [shape = 'u8[131072]{0}', space=vmem, size = 0x20000, scoped, tag = 'input window, operand 0, single buffered']
    #allocation3 [shape = 's32[1]{0}', space=sflag, size = 0x4, scoped, tag = 'scoped memory for tpu_custom_call.1']
    #allocation4 [shape = 's32[1]{0}', space=sflag, size = 0x4, scoped, tag = 'scoped memory for tpu_custom_call.1']
    #allocation5 [shape = 'u8[65536]{0}', space=vmem, size = 0x10000, scoped, tag = 'input window, operand 1, single buffered']
    #allocation6 [shape = 's32[1]{0}', space=sflag, size = 0x4, scoped, tag = 'scoped memory for tpu_custom_call.1']
    #allocation7 [shape = 'u8[8192]{0}', space=vmem, size = 0x2000, scoped, tag = 'output window, operand 0, single buffered']
    %7 = vsyncpa [#allocation3], 0
    %8 = vsyncpa [#allocation6], 0
    %9 = vsyncpa [#allocation4], 0
    // Predicated region
    $region2: #{tpu_custom_call.1} parent=1 // pred_check
      _
    $region3: #{tpu_custom_call.1} parent=1 // pred_check_branch
      %11 = sbr.rel (0) target = $region5
    $region4: #{tpu_custom_call.1} parent=1 // pred_region
      %s12 = sadd.s32 0, 0
      %s13 = smul.u32 16, %s12
      %s15 = ssub.s32 4096, 4096
      %16 = vsyncadd [#allocation3], %s15
      %s17 = smul.addr %s13, 2
      %s18 = smul.addr %s17, 128
      %s19 = scalar_lea.hbm %s0, %s18
      %s20 = sshll.u32 [#allocation2], 4
      %s21 = int_to_ptr.vmem [resolvable:$true] %s20
      %26 = dma.hbm_to_vmem [thread:$0]  %s19, 4096, %s21, [#allocation3], 256, 256, 16
    $region5: #{tpu_custom_call.1} parent=1 // pred_fallthru
      _
    // Predicated region
    $region6: #{tpu_custom_call.1} parent=1 // pred_check
      _
    $region7: #{tpu_custom_call.1} parent=1 // pred_check_branch
      %28 = sbr.rel (0) target = $region9
    $region8: #{tpu_custom_call.1} parent=1 // pred_region
      %s29 = sadd.s32 0, 0
      %s30 = smul.u32 16, %s29
      %s32 = ssub.s32 2048, 2048
      %33 = vsyncadd [#allocation6], %s32
      %s34 = smul.addr %s30, 2
      %s35 = smul.addr %s34, 64
      %s36 = scalar_lea.hbm %s1, %s35
      %s37 = sshll.u32 [#allocation5], 4
      %s38 = int_to_ptr.vmem [resolvable:$true] %s37
      %43 = dma.hbm_to_vmem [thread:$0]  %s36, 2048, %s38, [#allocation6], 128, 128, 8
    $region9: #{tpu_custom_call.1} parent=1 // pred_fallthru
      _
    // Predicated region
    $region10: #{tpu_custom_call.1} parent=1 // pred_check
      _
    $region11: #{tpu_custom_call.1} parent=1 // pred_check_branch
      %45 = sbr.rel (0) target = $region13
    $region12: #{tpu_custom_call.1} parent=1 // pred_region
      %46 = dma.done [#allocation3], 4096
    $region13: #{tpu_custom_call.1} parent=1 // pred_fallthru
      _
    // Predicated region
    $region14: #{tpu_custom_call.1} parent=1 // pred_check
      _
    $region15: #{tpu_custom_call.1} parent=1 // pred_check_branch
      %48 = sbr.rel (0) target = $region17
    $region16: #{tpu_custom_call.1} parent=1 // pred_region
      %49 = dma.done [#allocation6], 2048
    $region17: #{tpu_custom_call.1} parent=1 // pred_fallthru
      _
    %s50 = sadd.s32 0, 0
    %s51 = smul.u32 16, %s50
    %s52 = sadd.s32 0, 0
    %s53 = smul.u32 16, %s52
    %p54 = scmp.eq.s32.totalorder 0, 0
    %p55 = scmp.eq.s32.totalorder 0, 0
    %p56 = pnand %p54, %p55
    %p57 = pneg %p56
    // Predicated region
    $region18: #{tpu_custom_call.1} parent=1 // pred_check
      _
    $region19: #{tpu_custom_call.1} parent=1 // pred_check_branch
      %59 = sbr.rel (%p56) target = $region21
    $region20: #{tpu_custom_call.1} parent=1 // pred_region
      %60 = vst [vmem:[#allocation7] sm:$0xff] 0.0
      %61 = vst [vmem:[#allocation7 + $0x8] sm:$0xff] 0.0
    $region21: #{tpu_custom_call.1} parent=1 // pred_fallthru
      _
    %v62 = vld [vmem:[#allocation2] sm:$0xff]
    %v63 = vld [vmem:[#allocation2 + $0x8] sm:$0xff]
    %v64 = vld [vmem:[#allocation2 + $0x10] sm:$0xff]
    %v65 = vld [vmem:[#allocation2 + $0x18] sm:$0xff]
    %v66 = vld [vmem:[#allocation2 + $0x20] sm:$0xff]
    %v67 = vld [vmem:[#allocation2 + $0x28] sm:$0xff]
    %v68 = vld [vmem:[#allocation2 + $0x30] sm:$0xff]
    %v69 = vld [vmem:[#allocation2 + $0x38] sm:$0xff]
    %v70 = vld [vmem:[#allocation2 + $0x40] sm:$0xff]
    %v71 = vld [vmem:[#allocation2 + $0x48] sm:$0xff]
    %v72 = vld [vmem:[#allocation2 + $0x50] sm:$0xff]
    %v73 = vld [vmem:[#allocation2 + $0x58] sm:$0xff]
    %v74 = vld [vmem:[#allocation2 + $0x60] sm:$0xff]
    %v75 = vld [vmem:[#allocation2 + $0x68] sm:$0xff]
    %v76 = vld [vmem:[#allocation2 + $0x70] sm:$0xff]
    %v77 = vld [vmem:[#allocation2 + $0x78] sm:$0xff]
    %v78 = vld [vmem:[#allocation2 + $0x80] sm:$0xff]
    %v79 = vld [vmem:[#allocation2 + $0x88] sm:$0xff]
    %v80 = vld [vmem:[#allocation2 + $0x90] sm:$0xff]
    %v81 = vld [vmem:[#allocation2 + $0x98] sm:$0xff]
    %v82 = vld [vmem:[#allocation2 + $0xa0] sm:$0xff]
    %v83 = vld [vmem:[#allocation2 + $0xa8] sm:$0xff]
    %v84 = vld [vmem:[#allocation2 + $0xb0] sm:$0xff]
    %v85 = vld [vmem:[#allocation2 + $0xb8] sm:$0xff]
    %v86 = vld [vmem:[#allocation2 + $0xc0] sm:$0xff]
    %v87 = vld [vmem:[#allocation2 + $0xc8] sm:$0xff]
    %v88 = vld [vmem:[#allocation2 + $0xd0] sm:$0xff]
    %v89 = vld [vmem:[#allocation2 + $0xd8] sm:$0xff]
    %v90 = vld [vmem:[#allocation2 + $0xe0] sm:$0xff]
    %v91 = vld [vmem:[#allocation2 + $0xe8] sm:$0xff]
    %v92 = vld [vmem:[#allocation2 + $0xf0] sm:$0xff]
    %v93 = vld [vmem:[#allocation2 + $0xf8] sm:$0xff]
    %v94 = vld [vmem:[#allocation5] sm:$0xff]
    %v95 = vld [vmem:[#allocation5 + $0x8] sm:$0xff]
    %v96 = vld [vmem:[#allocation5 + $0x10] sm:$0xff]
    %v97 = vld [vmem:[#allocation5 + $0x18] sm:$0xff]
    %v98 = vld [vmem:[#allocation5 + $0x20] sm:$0xff]
    %v99 = vld [vmem:[#allocation5 + $0x28] sm:$0xff]
    %v100 = vld [vmem:[#allocation5 + $0x30] sm:$0xff]
    %v101 = vld [vmem:[#allocation5 + $0x38] sm:$0xff]
    %v102 = vld [vmem:[#allocation5 + $0x40] sm:$0xff]
    %v103 = vld [vmem:[#allocation5 + $0x48] sm:$0xff]
    %v104 = vld [vmem:[#allocation5 + $0x50] sm:$0xff]
    %v105 = vld [vmem:[#allocation5 + $0x58] sm:$0xff]
    %v106 = vld [vmem:[#allocation5 + $0x60] sm:$0xff]
    %v107 = vld [vmem:[#allocation5 + $0x68] sm:$0xff]
    %v108 = vld [vmem:[#allocation5 + $0x70] sm:$0xff]
    %v109 = vld [vmem:[#allocation5 + $0x78] sm:$0xff]
    %v110 = vunpack.c.l.bf16 %v94
    %v111 = vunpack.c.h.bf16 %v94
    %v112 = vunpack.c.l.bf16 %v95
    %v113 = vunpack.c.h.bf16 %v95
    %v114 = vunpack.c.l.bf16 %v96
    %v115 = vunpack.c.h.bf16 %v96
    %v116 = vunpack.c.l.bf16 %v97
    %v117 = vunpack.c.h.bf16 %v97
    %v118 = vunpack.c.l.bf16 %v98
    %v119 = vunpack.c.h.bf16 %v98
    %v120 = vunpack.c.l.bf16 %v99
    %v121 = vunpack.c.h.bf16 %v99
    %v122 = vunpack.c.l.bf16 %v100
    %v123 = vunpack.c.h.bf16 %v100
    %v124 = vunpack.c.l.bf16 %v101
    %v125 = vunpack.c.h.bf16 %v101
    %v126 = vunpack.c.l.bf16 %v102
    %v127 = vunpack.c.h.bf16 %v102
    %v128 = vunpack.c.l.bf16 %v103
    %v129 = vunpack.c.h.bf16 %v103
    %v130 = vunpack.c.l.bf16 %v104
    %v131 = vunpack.c.h.bf16 %v104
    %v132 = vunpack.c.l.bf16 %v105
    %v133 = vunpack.c.h.bf16 %v105
    %v134 = vunpack.c.l.bf16 %v106
    %v135 = vunpack.c.h.bf16 %v106
    %v136 = vunpack.c.l.bf16 %v107
    %v137 = vunpack.c.h.bf16 %v107
    %v138 = vunpack.c.l.bf16 %v108
    %v139 = vunpack.c.h.bf16 %v108
    %v140 = vunpack.c.l.bf16 %v109
    %v141 = vunpack.c.h.bf16 %v109
    %v142 = vmax.f32 %v62, 0.0
    %v143 = vmax.f32 %v63, 0.0
    %v144 = vmax.f32 %v64, 0.0
    %v145 = vmax.f32 %v65, 0.0
    %v146 = vmax.f32 %v66, 0.0
    %v147 = vmax.f32 %v67, 0.0
    %v148 = vmax.f32 %v68, 0.0
    %v149 = vmax.f32 %v69, 0.0
    %v150 = vmax.f32 %v70, 0.0
    %v151 = vmax.f32 %v71, 0.0
    %v152 = vmax.f32 %v72, 0.0
    %v153 = vmax.f32 %v73, 0.0
    %v154 = vmax.f32 %v74, 0.0
    %v155 = vmax.f32 %v75, 0.0
    %v156 = vmax.f32 %v76, 0.0
    %v157 = vmax.f32 %v77, 0.0
    %v158 = vmax.f32 %v78, 0.0
    %v159 = vmax.f32 %v79, 0.0
    %v160 = vmax.f32 %v80, 0.0
    %v161 = vmax.f32 %v81, 0.0
    %v162 = vmax.f32 %v82, 0.0
    %v163 = vmax.f32 %v83, 0.0
    %v164 = vmax.f32 %v84, 0.0
    %v165 = vmax.f32 %v85, 0.0
    %v166 = vmax.f32 %v86, 0.0
    %v167 = vmax.f32 %v87, 0.0
    %v168 = vmax.f32 %v88, 0.0
    %v169 = vmax.f32 %v89, 0.0
    %v170 = vmax.f32 %v90, 0.0
    %v171 = vmax.f32 %v91, 0.0
    %v172 = vmax.f32 %v92, 0.0
    %v173 = vmax.f32 %v93, 0.0
    %v174 = vmul.f32 %v62, %v110
    %v175 = vmul.f32 %v63, %v111
    %v176 = vmul.f32 %v64, %v112
    %v177 = vmul.f32 %v65, %v113
    %v178 = vmul.f32 %v66, %v114
    %v179 = vmul.f32 %v67, %v115
    %v180 = vmul.f32 %v68, %v116
    %v181 = vmul.f32 %v69, %v117
    %v182 = vmul.f32 %v70, %v118
    %v183 = vmul.f32 %v71, %v119
    %v184 = vmul.f32 %v72, %v120
    %v185 = vmul.f32 %v73, %v121
    %v186 = vmul.f32 %v74, %v122
    %v187 = vmul.f32 %v75, %v123
    %v188 = vmul.f32 %v76, %v124
    %v189 = vmul.f32 %v77, %v125
    %v190 = vmul.f32 %v78, %v126
    %v191 = vmul.f32 %v79, %v127
    %v192 = vmul.f32 %v80, %v128
    %v193 = vmul.f32 %v81, %v129
    %v194 = vmul.f32 %v82, %v130
    %v195 = vmul.f32 %v83, %v131
    %v196 = vmul.f32 %v84, %v132
    %v197 = vmul.f32 %v85, %v133
    %v198 = vmul.f32 %v86, %v134
    %v199 = vmul.f32 %v87, %v135
    %v200 = vmul.f32 %v88, %v136
    %v201 = vmul.f32 %v89, %v137
    %v202 = vmul.f32 %v90, %v138
    %v203 = vmul.f32 %v91, %v139
    %v204 = vmul.f32 %v92, %v140
    %v205 = vmul.f32 %v93, %v141
    %v206 = vsub.f32 %v142, %v174
    %v207 = vsub.f32 %v143, %v175
    %v208 = vsub.f32 %v144, %v176
    %v209 = vsub.f32 %v145, %v177
    %v210 = vsub.f32 %v146, %v178
    %v211 = vsub.f32 %v147, %v179
    %v212 = vsub.f32 %v148, %v180
    %v213 = vsub.f32 %v149, %v181
    %v214 = vsub.f32 %v150, %v182
    %v215 = vsub.f32 %v151, %v183
    %v216 = vsub.f32 %v152, %v184
    %v217 = vsub.f32 %v153, %v185
    %v218 = vsub.f32 %v154, %v186
    %v219 = vsub.f32 %v155, %v187
    %v220 = vsub.f32 %v156, %v188
    %v221 = vsub.f32 %v157, %v189
    %v222 = vsub.f32 %v158, %v190
    %v223 = vsub.f32 %v159, %v191
    %v224 = vsub.f32 %v160, %v192
    %v225 = vsub.f32 %v161, %v193
    %v226 = vsub.f32 %v162, %v194
    %v227 = vsub.f32 %v163, %v195
    %v228 = vsub.f32 %v164, %v196
    %v229 = vsub.f32 %v165, %v197
    %v230 = vsub.f32 %v166, %v198
    %v231 = vsub.f32 %v167, %v199
    %v232 = vsub.f32 %v168, %v200
    %v233 = vsub.f32 %v169, %v201
    %v234 = vsub.f32 %v170, %v202
    %v235 = vsub.f32 %v171, %v203
    %v236 = vsub.f32 %v172, %v204
    %v237 = vsub.f32 %v173, %v205
    %v238 = vand.u32 2147483647, %v62
    %v239 = vand.u32 2147483647, %v63
    %v240 = vand.u32 2147483647, %v64
    %v241 = vand.u32 2147483647, %v65
    %v242 = vand.u32 2147483647, %v66
    %v243 = vand.u32 2147483647, %v67
    %v244 = vand.u32 2147483647, %v68
    %v245 = vand.u32 2147483647, %v69
    %v246 = vand.u32 2147483647, %v70
    %v247 = vand.u32 2147483647, %v71
    %v248 = vand.u32 2147483647, %v72
    %v249 = vand.u32 2147483647, %v73
    %v250 = vand.u32 2147483647, %v74
    %v251 = vand.u32 2147483647, %v75
    %v252 = vand.u32 2147483647, %v76
    %v253 = vand.u32 2147483647, %v77
    %v254 = vand.u32 2147483647, %v78
    %v255 = vand.u32 2147483647, %v79
    %v256 = vand.u32 2147483647, %v80
    %v257 = vand.u32 2147483647, %v81
    %v258 = vand.u32 2147483647, %v82
    %v259 = vand.u32 2147483647, %v83
    %v260 = vand.u32 2147483647, %v84
    %v261 = vand.u32 2147483647, %v85
    %v262 = vand.u32 2147483647, %v86
    %v263 = vand.u32 2147483647, %v87
    %v264 = vand.u32 2147483647, %v88
    %v265 = vand.u32 2147483647, %v89
    %v266 = vand.u32 2147483647, %v90
    %v267 = vand.u32 2147483647, %v91
    %v268 = vand.u32 2147483647, %v92
    %v269 = vand.u32 2147483647, %v93
    %v270 = vsub.f32 0.0, %v238
    %v271 = vsub.f32 0.0, %v239
    %v272 = vsub.f32 0.0, %v240
    %v273 = vsub.f32 0.0, %v241
    %v274 = vsub.f32 0.0, %v242
    %v275 = vsub.f32 0.0, %v243
    %v276 = vsub.f32 0.0, %v244
    %v277 = vsub.f32 0.0, %v245
    %v278 = vsub.f32 0.0, %v246
    %v279 = vsub.f32 0.0, %v247
    %v280 = vsub.f32 0.0, %v248
    %v281 = vsub.f32 0.0, %v249
    %v282 = vsub.f32 0.0, %v250
    %v283 = vsub.f32 0.0, %v251
    %v284 = vsub.f32 0.0, %v252
    %v285 = vsub.f32 0.0, %v253
    %v286 = vsub.f32 0.0, %v254
    %v287 = vsub.f32 0.0, %v255
    %v288 = vsub.f32 0.0, %v256
    %v289 = vsub.f32 0.0, %v257
    %v290 = vsub.f32 0.0, %v258
    %v291 = vsub.f32 0.0, %v259
    %v292 = vsub.f32 0.0, %v260
    %v293 = vsub.f32 0.0, %v261
    %v294 = vsub.f32 0.0, %v262
    %v295 = vsub.f32 0.0, %v263
    %v296 = vsub.f32 0.0, %v264
    %v297 = vsub.f32 0.0, %v265
    %v298 = vsub.f32 0.0, %v266
    %v299 = vsub.f32 0.0, %v267
    %v300 = vsub.f32 0.0, %v268
    %v301 = vsub.f32 0.0, %v269
    %v302 = vmul.f32 %v270, 1.442695
    %v303 = vpow.pop %v302
    %v304 = vmul.f32 %v271, 1.442695
    %v305 = vpow.pop %v304
    %v306 = vmul.f32 %v272, 1.442695
    %v307 = vpow.pop %v306
    %v308 = vmul.f32 %v273, 1.442695
    %v309 = vpow.pop %v308
    %v310 = vmul.f32 %v274, 1.442695
    %v311 = vpow.pop %v310
    %v312 = vmul.f32 %v275, 1.442695
    %v313 = vpow.pop %v312
    %v314 = vmul.f32 %v276, 1.442695
    %v315 = vpow.pop %v314
    %v316 = vmul.f32 %v277, 1.442695
    %v317 = vpow.pop %v316
    %v318 = vmul.f32 %v278, 1.442695
    %v319 = vpow.pop %v318
    %v320 = vmul.f32 %v279, 1.442695
    %v321 = vpow.pop %v320
    %v322 = vmul.f32 %v280, 1.442695
    %v323 = vpow.pop %v322
    %v324 = vmul.f32 %v281, 1.442695
    %v325 = vpow.pop %v324
    %v326 = vmul.f32 %v282, 1.442695
    %v327 = vpow.pop %v326
    %v328 = vmul.f32 %v283, 1.442695
    %v329 = vpow.pop %v328
    %v330 = vmul.f32 %v284, 1.442695
    %v331 = vpow.pop %v330
    %v332 = vmul.f32 %v285, 1.442695
    %v333 = vpow.pop %v332
    %v334 = vmul.f32 %v286, 1.442695
    %v335 = vpow.pop %v334
    %v336 = vmul.f32 %v287, 1.442695
    %v337 = vpow.pop %v336
    %v338 = vmul.f32 %v288, 1.442695
    %v339 = vpow.pop %v338
    %v340 = vmul.f32 %v289, 1.442695
    %v341 = vpow.pop %v340
    %v342 = vmul.f32 %v290, 1.442695
    %v343 = vpow.pop %v342
    %v344 = vmul.f32 %v291, 1.442695
    %v345 = vpow.pop %v344
    %v346 = vmul.f32 %v292, 1.442695
    %v347 = vpow.pop %v346
    %v348 = vmul.f32 %v293, 1.442695
    %v349 = vpow.pop %v348
    %v350 = vmul.f32 %v294, 1.442695
    %v351 = vpow.pop %v350
    %v352 = vmul.f32 %v295, 1.442695
    %v353 = vpow.pop %v352
    %v354 = vmul.f32 %v296, 1.442695
    %v355 = vpow.pop %v354
    %v356 = vmul.f32 %v297, 1.442695
    %v357 = vpow.pop %v356
    %v358 = vmul.f32 %v298, 1.442695
    %v359 = vpow.pop %v358
    %v360 = vmul.f32 %v299, 1.442695
    %v361 = vpow.pop %v360
    %v362 = vmul.f32 %v300, 1.442695
    %v363 = vpow.pop %v362
    %v364 = vmul.f32 %v301, 1.442695
    %v365 = vpow.pop %v364
    %v366 = vadd.f32 %v303, 1.0
    %v367 = vlog2.pop %v366
    %v368 = vmul.f32 %v367, 0.6931472
    %v369 = vmul.f32 -0.5, %v303
    %v370 = vadd.f32 %v369, 1.0
    %v371 = vmul.f32 %v370, %v303
    %v372 = vand.u32 2147483647, %v303
    %vm373 = vcmp.lt.f32.partialorder %v372, 0.0004427343
    %v374 = vsel %vm373, %v371, %v368
    %v375 = vadd.f32 %v305, 1.0
    %v376 = vlog2.pop %v375
    %v377 = vmul.f32 %v376, 0.6931472
    %v378 = vmul.f32 -0.5, %v305
    %v379 = vadd.f32 %v378, 1.0
    %v380 = vmul.f32 %v379, %v305
    %v381 = vand.u32 2147483647, %v305
    %vm382 = vcmp.lt.f32.partialorder %v381, 0.0004427343
    %v383 = vsel %vm382, %v380, %v377
    %v384 = vadd.f32 %v307, 1.0
    %v385 = vlog2.pop %v384
    %v386 = vmul.f32 %v385, 0.6931472
    %v387 = vmul.f32 -0.5, %v307
    %v388 = vadd.f32 %v387, 1.0
    %v389 = vmul.f32 %v388, %v307
    %v390 = vand.u32 2147483647, %v307
    %vm391 = vcmp.lt.f32.partialorder %v390, 0.0004427343
    %v392 = vsel %vm391, %v389, %v386
    %v393 = vadd.f32 %v309, 1.0
    %v394 = vlog2.pop %v393
    %v395 = vmul.f32 %v394, 0.6931472
    %v396 = vmul.f32 -0.5, %v309
    %v397 = vadd.f32 %v396, 1.0
    %v398 = vmul.f32 %v397, %v309
    %v399 = vand.u32 2147483647, %v309
    %vm400 = vcmp.lt.f32.partialorder %v399, 0.0004427343
    %v401 = vsel %vm400, %v398, %v395
    %v402 = vadd.f32 %v311, 1.0
    %v403 = vlog2.pop %v402
    %v404 = vmul.f32 %v403, 0.6931472
    %v405 = vmul.f32 -0.5, %v311
    %v406 = vadd.f32 %v405, 1.0
    %v407 = vmul.f32 %v406, %v311
    %v408 = vand.u32 2147483647, %v311
    %vm409 = vcmp.lt.f32.partialorder %v408, 0.0004427343
    %v410 = vsel %vm409, %v407, %v404
    %v411 = vadd.f32 %v313, 1.0
    %v412 = vlog2.pop %v411
    %v413 = vmul.f32 %v412, 0.6931472
    %v414 = vmul.f32 -0.5, %v313
    %v415 = vadd.f32 %v414, 1.0
    %v416 = vmul.f32 %v415, %v313
    %v417 = vand.u32 2147483647, %v313
    %vm418 = vcmp.lt.f32.partialorder %v417, 0.0004427343
    %v419 = vsel %vm418, %v416, %v413
    %v420 = vadd.f32 %v315, 1.0
    %v421 = vlog2.pop %v420
    %v422 = vmul.f32 %v421, 0.6931472
    %v423 = vmul.f32 -0.5, %v315
    %v424 = vadd.f32 %v423, 1.0
    %v425 = vmul.f32 %v424, %v315
    %v426 = vand.u32 2147483647, %v315
    %vm427 = vcmp.lt.f32.partialorder %v426, 0.0004427343
    %v428 = vsel %vm427, %v425, %v422
    %v429 = vadd.f32 %v317, 1.0
    %v430 = vlog2.pop %v429
    %v431 = vmul.f32 %v430, 0.6931472
    %v432 = vmul.f32 -0.5, %v317
    %v433 = vadd.f32 %v432, 1.0
    %v434 = vmul.f32 %v433, %v317
    %v435 = vand.u32 2147483647, %v317
    %vm436 = vcmp.lt.f32.partialorder %v435, 0.0004427343
    %v437 = vsel %vm436, %v434, %v431
    %v438 = vadd.f32 %v319, 1.0
    %v439 = vlog2.pop %v438
    %v440 = vmul.f32 %v439, 0.6931472
    %v441 = vmul.f32 -0.5, %v319
    %v442 = vadd.f32 %v441, 1.0
    %v443 = vmul.f32 %v442, %v319
    %v444 = vand.u32 2147483647, %v319
    %vm445 = vcmp.lt.f32.partialorder %v444, 0.0004427343
    %v446 = vsel %vm445, %v443, %v440
    %v447 = vadd.f32 %v321, 1.0
    %v448 = vlog2.pop %v447
    %v449 = vmul.f32 %v448, 0.6931472
    %v450 = vmul.f32 -0.5, %v321
    %v451 = vadd.f32 %v450, 1.0
    %v452 = vmul.f32 %v451, %v321
    %v453 = vand.u32 2147483647, %v321
    %vm454 = vcmp.lt.f32.partialorder %v453, 0.0004427343
    %v455 = vsel %vm454, %v452, %v449
    %v456 = vadd.f32 %v323, 1.0
    %v457 = vlog2.pop %v456
    %v458 = vmul.f32 %v457, 0.6931472
    %v459 = vmul.f32 -0.5, %v323
    %v460 = vadd.f32 %v459, 1.0
    %v461 = vmul.f32 %v460, %v323
    %v462 = vand.u32 2147483647, %v323
    %vm463 = vcmp.lt.f32.partialorder %v462, 0.0004427343
    %v464 = vsel %vm463, %v461, %v458
    %v465 = vadd.f32 %v325, 1.0
    %v466 = vlog2.pop %v465
    %v467 = vmul.f32 %v466, 0.6931472
    %v468 = vmul.f32 -0.5, %v325
    %v469 = vadd.f32 %v468, 1.0
    %v470 = vmul.f32 %v469, %v325
    %v471 = vand.u32 2147483647, %v325
    %vm472 = vcmp.lt.f32.partialorder %v471, 0.0004427343
    %v473 = vsel %vm472, %v470, %v467
    %v474 = vadd.f32 %v327, 1.0
    %v475 = vlog2.pop %v474
    %v476 = vmul.f32 %v475, 0.6931472
    %v477 = vmul.f32 -0.5, %v327
    %v478 = vadd.f32 %v477, 1.0
    %v479 = vmul.f32 %v478, %v327
    %v480 = vand.u32 2147483647, %v327
    %vm481 = vcmp.lt.f32.partialorder %v480, 0.0004427343
    %v482 = vsel %vm481, %v479, %v476
    %v483 = vadd.f32 %v329, 1.0
    %v484 = vlog2.pop %v483
    %v485 = vmul.f32 %v484, 0.6931472
    %v486 = vmul.f32 -0.5, %v329
    %v487 = vadd.f32 %v486, 1.0
    %v488 = vmul.f32 %v487, %v329
    %v489 = vand.u32 2147483647, %v329
    %vm490 = vcmp.lt.f32.partialorder %v489, 0.0004427343
    %v491 = vsel %vm490, %v488, %v485
    %v492 = vadd.f32 %v331, 1.0
    %v493 = vlog2.pop %v492
    %v494 = vmul.f32 %v493, 0.6931472
    %v495 = vmul.f32 -0.5, %v331
    %v496 = vadd.f32 %v495, 1.0
    %v497 = vmul.f32 %v496, %v331
    %v498 = vand.u32 2147483647, %v331
    %vm499 = vcmp.lt.f32.partialorder %v498, 0.0004427343
    %v500 = vsel %vm499, %v497, %v494
    %v501 = vadd.f32 %v333, 1.0
    %v502 = vlog2.pop %v501
    %v503 = vmul.f32 %v502, 0.6931472
    %v504 = vmul.f32 -0.5, %v333
    %v505 = vadd.f32 %v504, 1.0
    %v506 = vmul.f32 %v505, %v333
    %v507 = vand.u32 2147483647, %v333
    %vm508 = vcmp.lt.f32.partialorder %v507, 0.0004427343
    %v509 = vsel %vm508, %v506, %v503
    %v510 = vadd.f32 %v335, 1.0
    %v511 = vlog2.pop %v510
    %v512 = vmul.f32 %v511, 0.6931472
    %v513 = vmul.f32 -0.5, %v335
    %v514 = vadd.f32 %v513, 1.0
    %v515 = vmul.f32 %v514, %v335
    %v516 = vand.u32 2147483647, %v335
    %vm517 = vcmp.lt.f32.partialorder %v516, 0.0004427343
    %v518 = vsel %vm517, %v515, %v512
    %v519 = vadd.f32 %v337, 1.0
    %v520 = vlog2.pop %v519
    %v521 = vmul.f32 %v520, 0.6931472
    %v522 = vmul.f32 -0.5, %v337
    %v523 = vadd.f32 %v522, 1.0
    %v524 = vmul.f32 %v523, %v337
    %v525 = vand.u32 2147483647, %v337
    %vm526 = vcmp.lt.f32.partialorder %v525, 0.0004427343
    %v527 = vsel %vm526, %v524, %v521
    %v528 = vadd.f32 %v339, 1.0
    %v529 = vlog2.pop %v528
    %v530 = vmul.f32 %v529, 0.6931472
    %v531 = vmul.f32 -0.5, %v339
    %v532 = vadd.f32 %v531, 1.0
    %v533 = vmul.f32 %v532, %v339
    %v534 = vand.u32 2147483647, %v339
    %vm535 = vcmp.lt.f32.partialorder %v534, 0.0004427343
    %v536 = vsel %vm535, %v533, %v530
    %v537 = vadd.f32 %v341, 1.0
    %v538 = vlog2.pop %v537
    %v539 = vmul.f32 %v538, 0.6931472
    %v540 = vmul.f32 -0.5, %v341
    %v541 = vadd.f32 %v540, 1.0
    %v542 = vmul.f32 %v541, %v341
    %v543 = vand.u32 2147483647, %v341
    %vm544 = vcmp.lt.f32.partialorder %v543, 0.0004427343
    %v545 = vsel %vm544, %v542, %v539
    %v546 = vadd.f32 %v343, 1.0
    %v547 = vlog2.pop %v546
    %v548 = vmul.f32 %v547, 0.6931472
    %v549 = vmul.f32 -0.5, %v343
    %v550 = vadd.f32 %v549, 1.0
    %v551 = vmul.f32 %v550, %v343
    %v552 = vand.u32 2147483647, %v343
    %vm553 = vcmp.lt.f32.partialorder %v552, 0.0004427343
    %v554 = vsel %vm553, %v551, %v548
    %v555 = vadd.f32 %v345, 1.0
    %v556 = vlog2.pop %v555
    %v557 = vmul.f32 %v556, 0.6931472
    %v558 = vmul.f32 -0.5, %v345
    %v559 = vadd.f32 %v558, 1.0
    %v560 = vmul.f32 %v559, %v345
    %v561 = vand.u32 2147483647, %v345
    %vm562 = vcmp.lt.f32.partialorder %v561, 0.0004427343
    %v563 = vsel %vm562, %v560, %v557
    %v564 = vadd.f32 %v347, 1.0
    %v565 = vlog2.pop %v564
    %v566 = vmul.f32 %v565, 0.6931472
    %v567 = vmul.f32 -0.5, %v347
    %v568 = vadd.f32 %v567, 1.0
    %v569 = vmul.f32 %v568, %v347
    %v570 = vand.u32 2147483647, %v347
    %vm571 = vcmp.lt.f32.partialorder %v570, 0.0004427343
    %v572 = vsel %vm571, %v569, %v566
    %v573 = vadd.f32 %v349, 1.0
    %v574 = vlog2.pop %v573
    %v575 = vmul.f32 %v574, 0.6931472
    %v576 = vmul.f32 -0.5, %v349
    %v577 = vadd.f32 %v576, 1.0
    %v578 = vmul.f32 %v577, %v349
    %v579 = vand.u32 2147483647, %v349
    %vm580 = vcmp.lt.f32.partialorder %v579, 0.0004427343
    %v581 = vsel %vm580, %v578, %v575
    %v582 = vadd.f32 %v351, 1.0
    %v583 = vlog2.pop %v582
    %v584 = vmul.f32 %v583, 0.6931472
    %v585 = vmul.f32 -0.5, %v351
    %v586 = vadd.f32 %v585, 1.0
    %v587 = vmul.f32 %v586, %v351
    %v588 = vand.u32 2147483647, %v351
    %vm589 = vcmp.lt.f32.partialorder %v588, 0.0004427343
    %v590 = vsel %vm589, %v587, %v584
    %v591 = vadd.f32 %v353, 1.0
    %v592 = vlog2.pop %v591
    %v593 = vmul.f32 %v592, 0.6931472
    %v594 = vmul.f32 -0.5, %v353
    %v595 = vadd.f32 %v594, 1.0
    %v596 = vmul.f32 %v595, %v353
    %v597 = vand.u32 2147483647, %v353
    %vm598 = vcmp.lt.f32.partialorder %v597, 0.0004427343
    %v599 = vsel %vm598, %v596, %v593
    %v600 = vadd.f32 %v355, 1.0
    %v601 = vlog2.pop %v600
    %v602 = vmul.f32 %v601, 0.6931472
    %v603 = vmul.f32 -0.5, %v355
    %v604 = vadd.f32 %v603, 1.0
    %v605 = vmul.f32 %v604, %v355
    %v606 = vand.u32 2147483647, %v355
    %vm607 = vcmp.lt.f32.partialorder %v606, 0.0004427343
    %v608 = vsel %vm607, %v605, %v602
    %v609 = vadd.f32 %v357, 1.0
    %v610 = vlog2.pop %v609
    %v611 = vmul.f32 %v610, 0.6931472
    %v612 = vmul.f32 -0.5, %v357
    %v613 = vadd.f32 %v612, 1.0
    %v614 = vmul.f32 %v613, %v357
    %v615 = vand.u32 2147483647, %v357
    %vm616 = vcmp.lt.f32.partialorder %v615, 0.0004427343
    %v617 = vsel %vm616, %v614, %v611
    %v618 = vadd.f32 %v359, 1.0
    %v619 = vlog2.pop %v618
    %v620 = vmul.f32 %v619, 0.6931472
    %v621 = vmul.f32 -0.5, %v359
    %v622 = vadd.f32 %v621, 1.0
    %v623 = vmul.f32 %v622, %v359
    %v624 = vand.u32 2147483647, %v359
    %vm625 = vcmp.lt.f32.partialorder %v624, 0.0004427343
    %v626 = vsel %vm625, %v623, %v620
    %v627 = vadd.f32 %v361, 1.0
    %v628 = vlog2.pop %v627
    %v629 = vmul.f32 %v628, 0.6931472
    %v630 = vmul.f32 -0.5, %v361
    %v631 = vadd.f32 %v630, 1.0
    %v632 = vmul.f32 %v631, %v361
    %v633 = vand.u32 2147483647, %v361
    %vm634 = vcmp.lt.f32.partialorder %v633, 0.0004427343
    %v635 = vsel %vm634, %v632, %v629
    %v636 = vadd.f32 %v363, 1.0
    %v637 = vlog2.pop %v636
    %v638 = vmul.f32 %v637, 0.6931472
    %v639 = vmul.f32 -0.5, %v363
    %v640 = vadd.f32 %v639, 1.0
    %v641 = vmul.f32 %v640, %v363
    %v642 = vand.u32 2147483647, %v363
    %vm643 = vcmp.lt.f32.partialorder %v642, 0.0004427343
    %v644 = vsel %vm643, %v641, %v638
    %v645 = vadd.f32 %v365, 1.0
    %v646 = vlog2.pop %v645
    %v647 = vmul.f32 %v646, 0.6931472
    %v648 = vmul.f32 -0.5, %v365
    %v649 = vadd.f32 %v648, 1.0
    %v650 = vmul.f32 %v649, %v365
    %v651 = vand.u32 2147483647, %v365
    %vm652 = vcmp.lt.f32.partialorder %v651, 0.0004427343
    %v653 = vsel %vm652, %v650, %v647
    %v654 = vadd.f32 %v206, %v374
    %v655 = vadd.f32 %v207, %v383
    %v656 = vadd.f32 %v208, %v392
    %v657 = vadd.f32 %v209, %v401
    %v658 = vadd.f32 %v210, %v410
    %v659 = vadd.f32 %v211, %v419
    %v660 = vadd.f32 %v212, %v428
    %v661 = vadd.f32 %v213, %v437
    %v662 = vadd.f32 %v214, %v446
    %v663 = vadd.f32 %v215, %v455
    %v664 = vadd.f32 %v216, %v464
    %v665 = vadd.f32 %v217, %v473
    %v666 = vadd.f32 %v218, %v482
    %v667 = vadd.f32 %v219, %v491
    %v668 = vadd.f32 %v220, %v500
    %v669 = vadd.f32 %v221, %v509
    %v670 = vadd.f32 %v222, %v518
    %v671 = vadd.f32 %v223, %v527
    %v672 = vadd.f32 %v224, %v536
    %v673 = vadd.f32 %v225, %v545
    %v674 = vadd.f32 %v226, %v554
    %v675 = vadd.f32 %v227, %v563
    %v676 = vadd.f32 %v228, %v572
    %v677 = vadd.f32 %v229, %v581
    %v678 = vadd.f32 %v230, %v590
    %v679 = vadd.f32 %v231, %v599
    %v680 = vadd.f32 %v232, %v608
    %v681 = vadd.f32 %v233, %v617
    %v682 = vadd.f32 %v234, %v626
    %v683 = vadd.f32 %v235, %v635
    %v684 = vadd.f32 %v236, %v644
    %v685 = vadd.f32 %v237, %v653
    %v686 = vadd.f32 %v654, %v656
    %v687 = vadd.f32 %v686, %v658
    %v688 = vadd.f32 %v687, %v660
    %v689 = vadd.f32 %v688, %v662
    %v690 = vadd.f32 %v689, %v664
    %v691 = vadd.f32 %v690, %v666
    %v692 = vadd.f32 %v691, %v668
    %v693 = vadd.f32 %v692, %v670
    %v694 = vadd.f32 %v693, %v672
    %v695 = vadd.f32 %v694, %v674
    %v696 = vadd.f32 %v695, %v676
    %v697 = vadd.f32 %v696, %v678
    %v698 = vadd.f32 %v697, %v680
    %v699 = vadd.f32 %v698, %v682
    %v700 = vadd.f32 %v699, %v684
    %v701 = vadd.f32 %v655, %v657
    %v702 = vadd.f32 %v701, %v659
    %v703 = vadd.f32 %v702, %v661
    %v704 = vadd.f32 %v703, %v663
    %v705 = vadd.f32 %v704, %v665
    %v706 = vadd.f32 %v705, %v667
    %v707 = vadd.f32 %v706, %v669
    %v708 = vadd.f32 %v707, %v671
    %v709 = vadd.f32 %v708, %v673
    %v710 = vadd.f32 %v709, %v675
    %v711 = vadd.f32 %v710, %v677
    %v712 = vadd.f32 %v711, %v679
    %v713 = vadd.f32 %v712, %v681
    %v714 = vadd.f32 %v713, %v683
    %v715 = vadd.f32 %v714, %v685
    %v716 = vld [vmem:[#allocation7] sm:$0xff]
    %v717 = vld [vmem:[#allocation7 + $0x8] sm:$0xff]
    %v718 = vadd.f32 %v716, %v700
    %v719 = vadd.f32 %v717, %v715
    %720 = vst [vmem:[#allocation7] sm:$0xff] %v718
    %721 = vst [vmem:[#allocation7 + $0x8] sm:$0xff] %v719
    // Predicated region
    $region22: #{tpu_custom_call.1} parent=1 // pred_check
      _
    $region23: #{tpu_custom_call.1} parent=1 // pred_check_branch
      %723 = sbr.rel (0) target = $region25
    $region24: #{tpu_custom_call.1} parent=1 // pred_region
      %s725 = ssub.s32 256, 256
      %726 = vsyncadd [#allocation4], %s725
      %s728 = sshll.u32 [#allocation7], 4
      %s729 = int_to_ptr.vmem [resolvable:$true] %s728
      %731 = dma.vmem_to_hbm [thread:$0]  %s729, 256, %s2, [#allocation4]
    $region25: #{tpu_custom_call.1} parent=1 // pred_fallthru
      _
    // Predicated region
    $region26: #{tpu_custom_call.1} parent=1 // pred_check
      _
    $region27: #{tpu_custom_call.1} parent=1 // pred_check_branch
      %733 = sbr.rel (0) target = $region29
    $region28: #{tpu_custom_call.1} parent=1 // pred_region
      %734 = dma.done [#allocation4], 256
    $region29: #{tpu_custom_call.1} parent=1 // pred_fallthru
      _
    %735 = vsyncpa [#allocation3], 1
    %736 = vsyncpa [#allocation6], 1
    %737 = vsyncpa [#allocation4], 1

</llo_original>
